<compile_context>
chip_gen: v6e
topology: v6e:2x2x1
jax: 0.10.0
libtpu: 0.0.40
codegen_flags: <defaults>
</compile_context>

<pallas_src>
import functools

import jax
import jax.numpy as jnp
from jax.experimental import pallas as pl
from jax.experimental.pallas import tpu as pltpu


# ---------------------------------------------------------------------------
# Kernel
# ---------------------------------------------------------------------------
def _topk_accuracy_kernel(logits_ref, y_ref, partial_ref, *, top_k, total_n,
                          tile_n):
    i = pl.program_id(0)

    logits = logits_ref[...]                       # (TILE_N, C) native dtype
    y = y_ref[...]                                 # (TILE_N, 1) int32
    tn, c = logits.shape

    # 2-D iotas (TPU requires >= 2D iota).
    col = jax.lax.broadcasted_iota(jnp.int32, (tn, c), 1)
    row = jax.lax.broadcasted_iota(jnp.int32, (tn, 1), 0)

    # Mask padded rows of a partial last block against the global row count.
    valid = (i * tile_n + row) < total_n           # (TILE_N, 1) bool

    # Gather the true-class logit per row via a masked max (exactly one hit
    # for valid rows). Comparisons stay in the native dtype (exact).
    is_true = col == y                             # broadcast (N,1) -> (N,C)
    neg_inf = jnp.asarray(-jnp.inf, dtype=logits.dtype)
    true_logit = jnp.max(jnp.where(is_true, logits, neg_inf),
                         axis=1, keepdims=True)    # (TILE_N, 1)

    # Rank of the true logit (0 = largest), stable lower-index-first ties,
    # as a single fused lane reduction.
    beats = (logits > true_logit) | ((logits == true_logit) & (col < y))
    rank = jnp.sum(beats.astype(jnp.int32), axis=1, keepdims=True)

    matches = (rank < top_k) & valid               # (TILE_N, 1) bool
    partial = jnp.sum(matches.astype(jnp.int32))   # per-tile scalar count

    # Lane-dense per-tile partial count (this tile owns its own output block,
    # so the grid axis can be "parallel").
    partial_ref[...] = jnp.broadcast_to(partial, partial_ref.shape)


# ---------------------------------------------------------------------------
# Tile / VMEM sizing
# ---------------------------------------------------------------------------
_LABEL_ROW_BYTES = 512      # (tile_n, 1) int32 block is padded to 128 lanes in VMEM
_INTERM_BYTES_PER_ELEM = 24  # iota + compare masks + int32 conversion scratch


def _row_cost_bytes(c, itemsize):
    """Approx. VMEM bytes consumed per logits row inside the kernel."""
    return 2 * c * itemsize + 2 * _LABEL_ROW_BYTES + _INTERM_BYTES_PER_ELEM * c


def _vmem_budgets():
    """(streaming_budget_bytes, vmem_limit_cap_bytes) per TPU generation."""
    cap = None
    try:
        cap = getattr(pltpu.get_tpu_info(), "vmem_capacity_bytes", None)
    except Exception:
        cap = None
    if not cap or cap <= 0:
        cap = 64 * 1024 * 1024                    # assume smallest (v7x-class)
    if cap <= 64 * 1024 * 1024:                   # v7x: 64 MiB per TensorCore
        return 24 * 1024 * 1024, 48 * 1024 * 1024
    return 48 * 1024 * 1024, 100 * 1024 * 1024    # v5e/v6e: 128 MiB physical


def _pick_tile_n(n, c, itemsize, budget_bytes):
    """Largest sublane-aligned row tile whose per-tile footprint fits budget."""
    if n <= 8:
        return n
    rows = budget_bytes // _row_cost_bytes(c, itemsize)
    tile = min(n, max(8, int(rows)))
    if tile != n:
        tile = max(8, (tile // 8) * 8)            # sublane alignment
    return tile


# ---------------------------------------------------------------------------
# Wrapper
# ---------------------------------------------------------------------------
def multiclass_accuracy(y_hat_logits, y, top_k=1, tile_n=None):
    """Top-k multiclass accuracy. logits: (N, C) float, y: (N,) int labels."""
    n, c = y_hat_logits.shape
    itemsize = jnp.dtype(y_hat_logits.dtype).itemsize

    budget, limit_cap = _vmem_budgets()
    if tile_n is None:
        tile_n = _pick_tile_n(n, c, itemsize, budget)
    else:
        tile_n = min(int(tile_n), n)
        if tile_n != n:
            tile_n = max(8, (tile_n // 8) * 8)
    num_tiles = pl.cdiv(n, tile_n)

    # Labels as (N, 1) int32 so the class axis broadcasts along lanes.
    y_2d = y.astype(jnp.int32).reshape(n, 1)

    # Honest VMEM estimate: double-buffered logits + lane-padded label blocks
    # + in-kernel intermediates + partial-count output blocks + headroom.
    vmem_needed = (tile_n * _row_cost_bytes(c, itemsize)
                   + 2 * 8 * 128 * 4 + (2 << 20))
    vmem_limit = int(min(max(vmem_needed, 32 * 1024 * 1024), limit_cap))

    kernel = functools.partial(_topk_accuracy_kernel, top_k=int(top_k),
                               total_n=n, tile_n=tile_n)

    partials = pl.pallas_call(
        kernel,
        out_shape=jax.ShapeDtypeStruct((num_tiles, 8, 128), jnp.int32),
        grid_spec=pltpu.PrefetchScalarGridSpec(
            num_scalar_prefetch=0,
            grid=(num_tiles,),
            in_specs=[
                pl.BlockSpec((tile_n, c), lambda i: (i, 0)),
                pl.BlockSpec((tile_n, 1), lambda i: (i, 0)),
            ],
            out_specs=pl.BlockSpec((1, 8, 128), lambda i: (i, 0, 0)),
        ),
        compiler_params=pltpu.CompilerParams(
            dimension_semantics=("parallel",),
            vmem_limit_bytes=vmem_limit,
        ),
        cost_estimate=pl.CostEstimate(
            flops=int(5 * n * c),
            transcendentals=0,
            bytes_accessed=int(n * c * itemsize + 4 * n
                               + num_tiles * 8 * 128 * 4),
        ),
    )(y_hat_logits, y_2d)

    count = jnp.sum(partials[:, 0, 0])
    return count.astype(jnp.float32) / jnp.float32(n)


# ---------------------------------------------------------------------------
# Reference + tests
# ---------------------------------------------------------------------------
def _reference_accuracy(logits, y, top_k):
    # Pure-JAX reference mirroring torch.topk-based accuracy.
    _, idx = jax.lax.top_k(logits, top_k)          # (N, k)
    matches = jnp.any(idx == y[:, None], axis=1)
    return jnp.sum(matches).astype(jnp.float32) / logits.shape[0]


if __name__ == "__main__":
    key = jax.random.PRNGKey(0)
    k_logits, k_labels = jax.random.split(key)

    # Small shapes consistent with the module: batch=8 samples, 32 classes.
    N, C = 8, 32
    y_hat_logits = jax.random.normal(k_logits, (N, C), dtype=jnp.float32)
    y = jax.random.randint(k_labels, (N,), 0, C, dtype=jnp.int32)

    for top_k in (1, 3):
        acc = jax.block_until_ready(multiclass_accuracy(y_hat_logits, y, top_k=top_k))
        ref = jax.block_until_ready(_reference_accuracy(y_hat_logits, y, top_k))
        assert abs(float(acc) - float(ref)) < 1e-6, (top_k, float(acc), float(ref))

    # Exercise the gridded path: multiple row tiles, padded last block,
    # native bf16 streaming + per-tile partial-count outputs.
    N2, C2 = 20, 32
    k2a, k2b = jax.random.split(jax.random.PRNGKey(1))
    logits2 = jax.random.normal(k2a, (N2, C2), dtype=jnp.bfloat16)
    y2 = jax.random.randint(k2b, (N2,), 0, C2, dtype=jnp.int32)
    for top_k in (1, 5):
        acc = jax.block_until_ready(
            multiclass_accuracy(logits2, y2, top_k=top_k, tile_n=8))
        ref = jax.block_until_ready(
            _reference_accuracy(logits2.astype(jnp.float32), y2, top_k))
        assert abs(float(acc) - float(ref)) < 1e-6, (top_k, float(acc), float(ref))

    # Auto-sized tile path (single full block, rows not a multiple of 8).
    acc = jax.block_until_ready(multiclass_accuracy(logits2, y2, top_k=3))
    ref = jax.block_until_ready(
        _reference_accuracy(logits2.astype(jnp.float32), y2, 3))
    assert abs(float(acc) - float(ref)) < 1e-6, (float(acc), float(ref))

    print("KERNEL_OK")
</pallas_src>

<mosaic_0001>
module attributes {stable_mosaic.version = 11 : i64} {
  func.func @_topk_accuracy_kernel(%arg0: i32, %arg1: memref<8x32xf32, #tpu.memory_space<vmem>>, %arg2: memref<8x1xi32, #tpu.memory_space<vmem>>, %arg3: memref<1x8x128xi32, #tpu.memory_space<vmem>>) attributes {dimension_semantics = [#tpu.dimension_semantics<parallel>], iteration_bounds = array<i64: 1>, scalar_prefetch = 0 : i64, scratch_operands = 0 : i64, tpu.core_type = #tpu.core_type<tc>, window_params = [{transform_indices = @transform_0, window_bounds = array<i64: 8, 32>}, {transform_indices = @transform_1, window_bounds = array<i64: 8, 1>}, {transform_indices = @transform_2, window_bounds = array<i64: 1, 8, 128>}]} {
    %c0 = arith.constant 0 : index
    %c0_0 = arith.constant 0 : index
    %0 = vector.load %arg1[%c0, %c0_0] : memref<8x32xf32, #tpu.memory_space<vmem>>, vector<8x32xf32>
    %c0_1 = arith.constant 0 : index
    %c0_2 = arith.constant 0 : index
    %1 = vector.load %arg2[%c0_1, %c0_2] : memref<8x1xi32, #tpu.memory_space<vmem>>, vector<8x1xi32>
    %2 = tpu.iota {dimensions = array<i32: 1>} : vector<8x32xi32>
    %3 = tpu.iota {dimensions = array<i32: 0>} : vector<8x1xi32>
    %c8_i32 = arith.constant 8 : i32
    %4 = arith.muli %arg0, %c8_i32 : i32
    %5 = vector.broadcast %4 : i32 to vector<8x1xi32>
    %6 = arith.addi %5, %3 : vector<8x1xi32>
    %c8_i32_3 = arith.constant 8 : i32
    %7 = vector.broadcast %c8_i32_3 : i32 to vector<8x1xi32>
    %8 = arith.cmpi slt, %6, %7 : vector<8x1xi32>
    %9 = vector.broadcast %1 : vector<8x1xi32> to vector<8x32xi32>
    %10 = arith.cmpi eq, %2, %9 : vector<8x32xi32>
    %cst = arith.constant 0xFF800000 : f32
    %11 = vector.broadcast %cst : f32 to vector<8x32xf32>
    %12 = arith.select %10, %0, %11 : vector<8x32xi1>, vector<8x32xf32>
    %cst_4 = arith.constant dense<0xFF800000> : vector<8xf32>
    %13 = vector.multi_reduction <maximumf>, %12, %cst_4 [1] : vector<8x32xf32> to vector<8xf32>
    %14 = vector.shape_cast %13 : vector<8xf32> to vector<8x1xf32>
    %15 = vector.broadcast %14 : vector<8x1xf32> to vector<8x32xf32>
    %16 = arith.cmpf ogt, %0, %15 : vector<8x32xf32>
    %17 = vector.broadcast %14 : vector<8x1xf32> to vector<8x32xf32>
    %18 = arith.cmpf oeq, %0, %17 : vector<8x32xf32>
    %19 = vector.broadcast %1 : vector<8x1xi32> to vector<8x32xi32>
    %20 = arith.cmpi slt, %2, %19 : vector<8x32xi32>
    %21 = arith.andi %18, %20 : vector<8x32xi1>
    %22 = arith.ori %16, %21 : vector<8x32xi1>
    %23 = arith.extui %22 : vector<8x32xi1> to vector<8x32xi32>
    %cst_5 = arith.constant dense<0> : vector<8xi32>
    %24 = vector.multi_reduction <add>, %23, %cst_5 [1] : vector<8x32xi32> to vector<8xi32>
    %25 = vector.shape_cast %24 : vector<8xi32> to vector<8x1xi32>
    %c1_i32 = arith.constant 1 : i32
    %26 = vector.broadcast %c1_i32 : i32 to vector<8x1xi32>
    %27 = arith.cmpi slt, %25, %26 : vector<8x1xi32>
    %28 = arith.andi %27, %8 : vector<8x1xi1>
    %29 = arith.extui %28 : vector<8x1xi1> to vector<8x1xi32>
    %30 = vector.shape_cast %29 : vector<8x1xi32> to vector<1x8x1xi32>
    %cst_6 = arith.constant dense<0> : vector<1xi32>
    %31 = vector.multi_reduction <add>, %30, %cst_6 [1, 2] : vector<1x8x1xi32> to vector<1xi32>
    %32 = vector.shape_cast %31 : vector<1xi32> to vector<1x1x1xi32>
    %33 = vector.extract %32[0, 0, 0] : i32 from vector<1x1x1xi32>
    %34 = vector.broadcast %33 : i32 to vector<1x8x128xi32>
    %c0_7 = arith.constant 0 : index
    %c0_8 = arith.constant 0 : index
    %c0_9 = arith.constant 0 : index
    %35 = vector.load %arg3[%c0_7, %c0_8, %c0_9] : memref<1x8x128xi32, #tpu.memory_space<vmem>>, vector<1x8x128xi32>
    tpu.vector_store %arg3[%c0_7, %c0_8, %c0_9], %34 {strides = array<i32>} : memref<1x8x128xi32, #tpu.memory_space<vmem>>, vector<1x8x128xi32>,
    return
  }
  func.func @transform_0(%arg0: i32) -> (i32, i32) {
    %c0_i32 = arith.constant 0 : i32
    %c0_i32_0 = arith.constant 0 : i32
    return %arg0, %c0_i32 : i32, i32
  }
  func.func @transform_1(%arg0: i32) -> (i32, i32) {
    %c0_i32 = arith.constant 0 : i32
    %c0_i32_0 = arith.constant 0 : i32
    return %arg0, %c0_i32 : i32, i32
  }
  func.func @transform_2(%arg0: i32) -> (i32, i32, i32) {
    %c0_i32 = arith.constant 0 : i32
    %c0_i32_0 = arith.constant 0 : i32
    %c0_i32_1 = arith.constant 0 : i32
    return %arg0, %c0_i32, %c0_i32_0 : i32, i32, i32
  }
}

</mosaic_0001>

<llo_original>
// kernel: tpu_custom_call.1
$region0: #{tpu_custom_call.1}
  #allocation0 [shape = 'u32[]', space=smem, size = 0x4, offset = 0x4, fixed_abs, tag = 'smem constant byte address 0x4 - core index']
  #allocation1 [shape = 'u32[144,128]{1,0:T(1,128)}', space=vmem, size = 0x12000, scoped, tag = 'internal scratch']
  %s0 = inlined_call_operand.vmem [shape: f32[8,32], index: 0, kind: input, shape index: {}]
  %s1 = inlined_call_operand.vmem [shape: s32[8,1], index: 1, kind: input, shape index: {}]
  %s2 = inlined_call_operand.hbm [shape: s32[1,8,128], index: 2, kind: output, shape index: {}]
  %s3 = sld [smem:[#allocation0]]
  $region18: #{tpu_custom_call.1} parent=0
    _
  %s5 = ssub.s32 1, %s3
  %s6 = scalar_select 0, %s5, %s3
  $region1: #{tpu_custom_call.1} parent=0
    #allocation2 [shape = 'u8[4096]{0}', space=vmem, size = 0x1000, scoped, tag = 'output window, operand 0, single buffered']
    #allocation3 [shape = 's32[1]{0}', space=sflag, size = 0x4, scoped, tag = 'scoped memory for tpu_custom_call.1']
    %7 = vsyncpa [#allocation3], 0
    // Predicated region
    $region2: #{tpu_custom_call.1} parent=1 // pred_check
      _
    $region3: #{tpu_custom_call.1} parent=1 // pred_check_branch
      %9 = sbr.rel (0) target = $region5
    $region4: #{tpu_custom_call.1} parent=1 // pred_region
      _
    $region5: #{tpu_custom_call.1} parent=1 // pred_fallthru
      _
    // Predicated region
    $region6: #{tpu_custom_call.1} parent=1 // pred_check
      _
    $region7: #{tpu_custom_call.1} parent=1 // pred_check_branch
      %11 = sbr.rel (0) target = $region9
    $region8: #{tpu_custom_call.1} parent=1 // pred_region
      _
    $region9: #{tpu_custom_call.1} parent=1 // pred_fallthru
      _
    %v12 = vld [vmem:[%s0] sm:$0xff]
    %v13 = vld [vmem:[%s1] sm:$0xff]
    %v14 = vlaneseq
    %v15 = vand.u32 %v14, 127
    %v16 = vlaneseq
    %v17 = vshrl.u32 %v16, 7
    %s18 = smul.u32 0, 8
    %v19 = vstv %s18
    %v20 = vadd.s32 %v19, %v17
    %vm21 = vcmp.lt.s32.totalorder %v20, 8
    %22 = vset.pattern.permute.xlu0 0
    %23 = vperm.xlu0 %22, %v13
    %v24 = vpop.permute.xlu0 %23
    %vm25 = vcmp.eq.s32.totalorder %v15, %v24
    %v26 = vsel %vm25, %v12, -inf
    %vm27 = vcmask 261120
    %v28 = vsel %vm27, %v26, -inf
    %29 = vmax.xlane.f32.xlu0 %v28
    %v30 = vpop.xlane.xlu0 %29
    %vm31 = vcmp.gt.f32.partialorder %v12, %v30
    %vm32 = vcmp.eq.f32.partialorder %v12, %v30
    %vm33 = vcmp.lt.s32.totalorder %v15, %v24
    %vm34 = vmand %vm32, %vm33
    %vm35 = vmor %vm31, %vm34
    %v36 = vsel %vm35, 1, 0
    %v37 = vsel %vm27, %v36, 0
    %v38 = vand.u32 %v37, 65535
    %v39 = vshrl.u32 %v37, 16
    %v40 = vcvt.s32.f32 %v38
    %v41 = vcvt.s32.f32 %v39
    %42 = vadd.xlane.f32.xlu0 %v40
    %v43 = vpop.xlane.xlu0 %42
    %44 = vadd.xlane.f32.xlu0 %v41
    %v45 = vpop.xlane.xlu0 %44
    %v46 = vcvt.f32.s32 %v43
    %v47 = vcvt.f32.s32 %v45
    %v48 = vshll.u32 %v47, 16
    %v49 = vadd.s32 %v48, %v46
    %vm50 = vcmp.lt.s32.totalorder %v49, 1
    %vm51 = vmand %vm50, %vm21
    %v52 = vsel %vm51, 1, 0
    %v53 = vrot.slane %v52, 4
    %v54 = vadd.s32 %v52, %v53
    %v55 = vrot.slane %v54, 2
    %v56 = vadd.s32 %v54, %v55
    %v57 = vrot.slane %v56, 1
    %v58 = vadd.s32 %v56, %v57
    %s59 = vtos %v58
    %v60 = vstv %s59
    %61 = vst [vmem:[#allocation2] sm:$0xff] %v60
    // Predicated region
    $region10: #{tpu_custom_call.1} parent=1 // pred_check
      _
    $region11: #{tpu_custom_call.1} parent=1 // pred_check_branch
      %63 = sbr.rel (0) target = $region13
    $region12: #{tpu_custom_call.1} parent=1 // pred_region
      %s65 = ssub.s32 128, 128
      %66 = vsyncadd [#allocation3], %s65
      %s68 = sshll.u32 [#allocation2], 4
      %s69 = int_to_ptr.vmem [resolvable:$true] %s68
      %71 = dma.vmem_to_hbm [thread:$0]  %s69, 128, %s2, [#allocation3]
    $region13: #{tpu_custom_call.1} parent=1 // pred_fallthru
      _
    // Predicated region
    $region14: #{tpu_custom_call.1} parent=1 // pred_check
      _
    $region15: #{tpu_custom_call.1} parent=1 // pred_check_branch
      %73 = sbr.rel (0) target = $region17
    $region16: #{tpu_custom_call.1} parent=1 // pred_region
      %74 = dma.done [#allocation3], 128
    $region17: #{tpu_custom_call.1} parent=1 // pred_fallthru
      _
    %75 = vsyncpa [#allocation3], 1

</llo_original>
